<compile_context>
chip_gen: v7x
topology: tpu7x:2x2x1
jax: 0.10.0
libtpu: 0.0.40
codegen_flags: <defaults>
</compile_context>

<pallas_src>
import functools

import jax
import jax.numpy as jnp
from jax.experimental import pallas as pl
from jax.experimental.pallas import tpu as pltpu


def _round_up(n, m):
    return (n + m - 1) // m * m


def _cdiv(a, b):
    return (a + b - 1) // b


def _pad_to(a, rows, cols, dtype):
    a = a.astype(dtype)
    pr, pc = rows - a.shape[0], cols - a.shape[1]
    if pr or pc:
        a = jnp.pad(a, ((0, pr), (0, pc)))
    return a


def _tpu_vmem_bytes(default=64 << 20):
    """Best-effort per-core VMEM capacity (128 MiB v5e/v6e, 64 MiB/TC v7x)."""
    try:
        info = pltpu.get_tpu_info()
        cap = getattr(info, "vmem_capacity_bytes", None)
        if cap:
            return int(cap)
    except Exception:
        pass
    return default


def _tpu_num_cores(default=1):
    """Best-effort TensorCore count per chip (2 on v7x, else 1)."""
    try:
        info = pltpu.get_tpu_info()
        for name in ("num_tensorcores", "tensorcore_count", "num_cores", "core_count"):
            v = getattr(info, name, None)
            if v:
                return int(v)
    except Exception:
        pass
    return default


def mlp_kernel(x_ref, w1_ref, b1_ref, w2_ref, b2_ref, o_ref, acc_ref):
    """Grid = (batch_tiles [parallel], hid_chunks [arbitrary, reduction])."""
    k = pl.program_id(1)

    @pl.when(k == 0)
    def _init():
        acc_ref[...] = jnp.zeros_like(acc_ref)

    # In-kernel bf16 cast of the f32 input tile: avoids a separate wrapper-side
    # cast pass over x in HBM; costs only VPU slots that have slack.
    x = x_ref[...].astype(w1_ref.dtype)

    # Layer 1 (this hid chunk): MXU matmul, f32 accumulation, f32 bias + ReLU.
    h = jnp.dot(x, w1_ref[...], preferred_element_type=jnp.float32)
    h = jnp.maximum(h + b1_ref[...], 0.0)

    # Layer 2 partial: cast activations to bf16 for the MXU, accumulate the
    # chunk's contribution into the resident f32 accumulator scratch.
    acc_ref[...] += jnp.dot(h.astype(w2_ref.dtype), w2_ref[...],
                            preferred_element_type=jnp.float32)

    @pl.when(k == pl.num_programs(1) - 1)
    def _store():
        o_ref[...] = (acc_ref[...] + b2_ref[...]).astype(o_ref.dtype)


def prepare_mlp_params(w1, b1, w2, b2, *, compute_dtype=jnp.bfloat16, hid_chunk=512):
    """Pad / cast the weights ONCE (lane-dense, chunk-aligned), not per call.

    w1: [in_dim, hid], b1: [hid], w2: [hid, out_dim], b2: [out_dim].
    Zero padding is exact: padded columns/rows hit zero weights & zero bias.
    """
    in_dim, hid = w1.shape
    hid2, out_dim = w2.shape
    assert hid2 == hid and b1.shape == (hid,) and b2.shape == (out_dim,)

    lane = 128
    in_p = _round_up(in_dim, lane)
    out_p = _round_up(out_dim, lane)
    hid_l = _round_up(hid, lane)
    # Hidden-dim chunking: nk chunks of hk (multiple of 128, <= ~hid_chunk),
    # chosen so the padded hidden dim has no wasted chunks.
    nk = max(1, _cdiv(hid_l, hid_chunk))
    hk = _round_up(_cdiv(hid_l, nk), lane)
    hid_p = nk * hk

    return {
        "w1": _pad_to(w1, in_p, hid_p, compute_dtype),
        "b1": _pad_to(b1.reshape(1, -1), 1, hid_p, jnp.float32),
        "w2": _pad_to(w2, hid_p, out_p, compute_dtype),
        "b2": _pad_to(b2.reshape(1, -1), 1, out_p, jnp.float32),
        "dims": (in_dim, hid, out_dim),
        "padded": (in_p, hid_p, out_p),
        "hk": hk,
    }


def mlp_forward(x, params, *, block_batch=256, out_dtype=None):
    """x: [B, in_dim] (f32); params: output of prepare_mlp_params."""
    in_dim, _, out_dim = params["dims"]
    in_p, hid_p, out_p = params["padded"]
    hk = params["hk"]
    w1_p, b1_p, w2_p, b2_p = params["w1"], params["b1"], params["w2"], params["b2"]

    B = x.shape[0]
    assert x.shape[1] == in_dim
    out_dtype = x.dtype if out_dtype is None else out_dtype

    csz = jnp.dtype(w1_p.dtype).itemsize
    xsz = jnp.dtype(x.dtype).itemsize
    osz = jnp.dtype(out_dtype).itemsize
    sub = 8  # f32 input tile -> 8-sublane alignment

    # Batch tile: as large as requested; only force a split across batch tiles
    # when >1 TensorCore is detected (v7x megacore), otherwise keep one tile.
    bb = max(sub, min(_round_up(block_batch, sub), _round_up(B, sub)))
    n_cores = _tpu_num_cores()
    if n_cores >= 2 and B > sub and _round_up(B, bb) // bb < n_cores:
        bb = max(sub, _round_up(_cdiv(B, n_cores), sub))
    B_p = _round_up(B, bb)
    nb = B_p // bb
    nk = hid_p // hk
    grid = (nb, nk)

    # Only x gets padded at call time (weights were padded once at prep time).
    x_p = _pad_to(x, B_p, in_p, x.dtype)

    # Advisory cost estimate for XLA's scheduler.
    flops = 2 * B_p * in_p * hid_p + 2 * B_p * hid_p * out_p
    bytes_accessed = (B_p * in_p * xsz
                      + nb * (in_p * hid_p + hid_p * out_p) * csz
                      + nb * (hid_p + nk * out_p) * 4
                      + B_p * out_p * osz)

    # Per-step VMEM footprint: double-buffered blocks + the declared f32
    # accumulator scratch + the (bb, hk) layer-1 intermediate Mosaic spills.
    vmem_need = (2 * bb * in_p * xsz
                 + 2 * (in_p * hk + hk * out_p) * csz
                 + 2 * (hk + out_p) * 4
                 + 2 * bb * out_p * osz
                 + bb * out_p * 4        # accumulator scratch
                 + bb * hk * 4)          # layer-1 f32 intermediate
    cap = _tpu_vmem_bytes()
    vmem_limit = int(min(max(vmem_need + (8 << 20), 32 << 20), cap - (8 << 20)))
    vmem_limit = max(vmem_limit, 16 << 20)

    in_specs = [
        pl.BlockSpec((bb, in_p), lambda i, k: (i, 0)),    # x tile (constant over k)
        pl.BlockSpec((in_p, hk), lambda i, k: (0, k)),    # W1 chunk (streamed)
        pl.BlockSpec((1, hk), lambda i, k: (0, k)),       # b1 chunk
        pl.BlockSpec((hk, out_p), lambda i, k: (k, 0)),   # W2 chunk (streamed)
        pl.BlockSpec((1, out_p), lambda i, k: (0, 0)),    # b2
    ]

    out = pl.pallas_call(
        mlp_kernel,
        out_shape=jax.ShapeDtypeStruct((B_p, out_p), out_dtype),
        grid_spec=pltpu.PrefetchScalarGridSpec(
            num_scalar_prefetch=0,
            grid=grid,
            in_specs=in_specs,
            out_specs=pl.BlockSpec((bb, out_p), lambda i, k: (i, 0)),
            scratch_shapes=[pltpu.VMEM((bb, out_p), jnp.float32)],
        ),
        compiler_params=pltpu.CompilerParams(
            dimension_semantics=("parallel", "arbitrary"),
            vmem_limit_bytes=vmem_limit,
        ),
        cost_estimate=pl.CostEstimate(
            flops=int(flops), transcendentals=0,
            bytes_accessed=int(bytes_accessed)),
    )(x_p, w1_p, b1_p, w2_p, b2_p)

    # Slice away batch / lane padding (padded rows contain relu(b1)@W2 garbage
    # by construction and must not be consumed).
    return out[:B, :out_dim]


def init_linear_params(kw, kb, fan_in, fan_out, dtype=jnp.float32):
    """Mimics torch.nn.Linear default init: U(-1/sqrt(fan_in), 1/sqrt(fan_in))."""
    bound = 1.0 / (fan_in ** 0.5)
    w = jax.random.uniform(kw, (fan_in, fan_out), dtype, minval=-bound, maxval=bound)
    b = jax.random.uniform(kb, (fan_out,), dtype, minval=-bound, maxval=bound)
    return w, b


if __name__ == "__main__":
    def mixed_precision_ref(x, w1, b1, w2, b2):
        # Same numerics as the kernel: bf16 MXU operands, f32 accumulation,
        # f32 bias/ReLU, activations rounded to bf16 between layers.
        f32 = jnp.float32
        xb = x.astype(jnp.bfloat16).astype(f32)
        w1b = w1.astype(jnp.bfloat16).astype(f32)
        w2b = w2.astype(jnp.bfloat16).astype(f32)
        h = jnp.maximum(xb @ w1b + b1, 0.0).astype(jnp.bfloat16).astype(f32)
        return h @ w2b + b2

    key = jax.random.PRNGKey(0)

    # Case 1: small MLP (single hidden chunk).
    # Case 2: hidden dim large enough to exercise the hid-chunk accumulator loop.
    for (batch, input_dim, hidden_dim, output_dim) in [(16, 32, 64, 16),
                                                       (16, 32, 1152, 16)]:
        key, kx, k1w, k1b, k2w, k2b = jax.random.split(key, 6)
        x = jax.random.normal(kx, (batch, input_dim), jnp.float32)
        w1, b1 = init_linear_params(k1w, k1b, input_dim, hidden_dim)
        w2, b2 = init_linear_params(k2w, k2b, hidden_dim, output_dim)

        params = prepare_mlp_params(w1, b1, w2, b2)
        fwd = jax.jit(functools.partial(mlp_forward, params=params))
        out = jax.block_until_ready(fwd(x))
        assert out.shape == (batch, output_dim)

        ref_mixed = mixed_precision_ref(x, w1, b1, w2, b2)
        assert jnp.allclose(out, ref_mixed, atol=1e-2, rtol=1e-2), "mixed-precision mismatch"

        # Sanity check against the exact f32 math of the PyTorch module.
        ref_f32 = jnp.maximum(x @ w1 + b1, 0.0) @ w2 + b2
        assert jnp.allclose(out, ref_f32, atol=5e-2, rtol=5e-2), "f32 reference mismatch"

    print("KERNEL_OK")
</pallas_src>

<mosaic_0001>
module attributes {stable_mosaic.version = 11 : i64} {
  func.func @mlp_kernel(%arg0: i32, %arg1: i32, %arg2: memref<16x128xf32, #tpu.memory_space<vmem>>, %arg3: memref<128x128xbf16, #tpu.memory_space<vmem>>, %arg4: memref<1x128xf32, #tpu.memory_space<vmem>>, %arg5: memref<128x128xbf16, #tpu.memory_space<vmem>>, %arg6: memref<1x128xf32, #tpu.memory_space<vmem>>, %arg7: memref<16x128xf32, #tpu.memory_space<vmem>>, %arg8: memref<16x128xf32, #tpu.memory_space<vmem>>) attributes {dimension_semantics = [#tpu.dimension_semantics<parallel>, #tpu.dimension_semantics<arbitrary>], iteration_bounds = array<i64: 1, 1>, scalar_prefetch = 0 : i64, scratch_operands = 1 : i64, tpu.core_type = #tpu.core_type<tc>, window_params = [{transform_indices = @transform_0, window_bounds = array<i64: 16, 128>}, {transform_indices = @transform_1, window_bounds = array<i64: 128, 128>}, {transform_indices = @transform_2, window_bounds = array<i64: 1, 128>}, {transform_indices = @transform_3, window_bounds = array<i64: 128, 128>}, {pipeline_mode = #tpu.pipeline_mode<synchronous>, transform_indices = @transform_4, window_bounds = array<i64: 1, 128>}, {transform_indices = @transform_5, window_bounds = array<i64: 16, 128>}]} {
    %c0_i32 = arith.constant 0 : i32
    %0 = arith.cmpi eq, %arg1, %c0_i32 : i32
    %1 = arith.extui %0 : i1 to i32
    %c0_i32_0 = arith.constant 0 : i32
    %2 = arith.cmpi ne, %1, %c0_i32_0 : i32
    scf.if %2 {
      %cst_16 = arith.constant 0.000000e+00 : f32
      %21 = vector.broadcast %cst_16 : f32 to vector<16x128xf32>
      %c0_17 = arith.constant 0 : index
      %c0_18 = arith.constant 0 : index
      %22 = vector.load %arg8[%c0_17, %c0_18] : memref<16x128xf32, #tpu.memory_space<vmem>>, vector<16x128xf32>
      tpu.vector_store %arg8[%c0_17, %c0_18], %21 {strides = array<i32>} : memref<16x128xf32, #tpu.memory_space<vmem>>, vector<16x128xf32>,
    } else {
    }
    %c0 = arith.constant 0 : index
    %c0_1 = arith.constant 0 : index
    %3 = vector.load %arg2[%c0, %c0_1] : memref<16x128xf32, #tpu.memory_space<vmem>>, vector<16x128xf32>
    %4 = arith.truncf %3 : vector<16x128xf32> to vector<16x128xbf16>
    %c0_2 = arith.constant 0 : index
    %c0_3 = arith.constant 0 : index
    %5 = vector.load %arg3[%c0_2, %c0_3] : memref<128x128xbf16, #tpu.memory_space<vmem>>, vector<128x128xbf16>
    %cst = arith.constant dense<0.000000e+00> : vector<16x128xf32>
    %6 = tpu.matmul %4, %5, %cst {dimension_numbers = #tpu.dot_dimension_numbers<[1], [0], [0], [1], [0, 0, 1, 1], [], []>} : vector<16x128xbf16>, vector<128x128xbf16>, vector<16x128xf32> -> vector<16x128xf32>
    %c0_4 = arith.constant 0 : index
    %c0_5 = arith.constant 0 : index
    %7 = vector.load %arg4[%c0_4, %c0_5] : memref<1x128xf32, #tpu.memory_space<vmem>>, vector<1x128xf32>
    %8 = vector.broadcast %7 : vector<1x128xf32> to vector<16x128xf32>
    %9 = arith.addf %6, %8 : vector<16x128xf32>
    %cst_6 = arith.constant 0.000000e+00 : f32
    %10 = vector.broadcast %cst_6 : f32 to vector<16x128xf32>
    %11 = arith.maximumf %9, %10 : vector<16x128xf32>
    %c0_7 = arith.constant 0 : index
    %c0_8 = arith.constant 0 : index
    %12 = vector.load %arg8[%c0_7, %c0_8] : memref<16x128xf32, #tpu.memory_space<vmem>>, vector<16x128xf32>
    %13 = arith.truncf %11 : vector<16x128xf32> to vector<16x128xbf16>
    %c0_9 = arith.constant 0 : index
    %c0_10 = arith.constant 0 : index
    %14 = vector.load %arg5[%c0_9, %c0_10] : memref<128x128xbf16, #tpu.memory_space<vmem>>, vector<128x128xbf16>
    %cst_11 = arith.constant dense<0.000000e+00> : vector<16x128xf32>
    %15 = tpu.matmul %13, %14, %cst_11 {dimension_numbers = #tpu.dot_dimension_numbers<[1], [0], [0], [1], [0, 0, 1, 1], [], []>} : vector<16x128xbf16>, vector<128x128xbf16>, vector<16x128xf32> -> vector<16x128xf32>
    %16 = arith.addf %12, %15 : vector<16x128xf32>
    %c0_12 = arith.constant 0 : index
    %c0_13 = arith.constant 0 : index
    %17 = vector.load %arg8[%c0_12, %c0_13] : memref<16x128xf32, #tpu.memory_space<vmem>>, vector<16x128xf32>
    tpu.vector_store %arg8[%c0_12, %c0_13], %16 {strides = array<i32>} : memref<16x128xf32, #tpu.memory_space<vmem>>, vector<16x128xf32>,
    %c0_i32_14 = arith.constant 0 : i32
    %18 = arith.cmpi eq, %arg1, %c0_i32_14 : i32
    %19 = arith.extui %18 : i1 to i32
    %c0_i32_15 = arith.constant 0 : i32
    %20 = arith.cmpi ne, %19, %c0_i32_15 : i32
    scf.if %20 {
      %c0_16 = arith.constant 0 : index
      %c0_17 = arith.constant 0 : index
      %21 = vector.load %arg8[%c0_16, %c0_17] : memref<16x128xf32, #tpu.memory_space<vmem>>, vector<16x128xf32>
      %c0_18 = arith.constant 0 : index
      %c0_19 = arith.constant 0 : index
      %22 = vector.load %arg6[%c0_18, %c0_19] : memref<1x128xf32, #tpu.memory_space<vmem>>, vector<1x128xf32>
      %23 = vector.broadcast %22 : vector<1x128xf32> to vector<16x128xf32>
      %24 = arith.addf %21, %23 : vector<16x128xf32>
      %c0_20 = arith.constant 0 : index
      %c0_21 = arith.constant 0 : index
      %25 = vector.load %arg7[%c0_20, %c0_21] : memref<16x128xf32, #tpu.memory_space<vmem>>, vector<16x128xf32>
      tpu.vector_store %arg7[%c0_20, %c0_21], %24 {strides = array<i32>} : memref<16x128xf32, #tpu.memory_space<vmem>>, vector<16x128xf32>,
    } else {
    }
    return
  }
  func.func @transform_0(%arg0: i32, %arg1: i32) -> (i32, i32) {
    %c0_i32 = arith.constant 0 : i32
    %c0_i32_0 = arith.constant 0 : i32
    return %arg0, %c0_i32 : i32, i32
  }
  func.func @transform_1(%arg0: i32, %arg1: i32) -> (i32, i32) {
    %c0_i32 = arith.constant 0 : i32
    %c0_i32_0 = arith.constant 0 : i32
    return %c0_i32, %arg1 : i32, i32
  }
  func.func @transform_2(%arg0: i32, %arg1: i32) -> (i32, i32) {
    %c0_i32 = arith.constant 0 : i32
    %c0_i32_0 = arith.constant 0 : i32
    return %c0_i32, %arg1 : i32, i32
  }
  func.func @transform_3(%arg0: i32, %arg1: i32) -> (i32, i32) {
    %c0_i32 = arith.constant 0 : i32
    %c0_i32_0 = arith.constant 0 : i32
    return %arg1, %c0_i32 : i32, i32
  }
  func.func @transform_4(%arg0: i32, %arg1: i32) -> (i32, i32) {
    %c0_i32 = arith.constant 0 : i32
    %c0_i32_0 = arith.constant 0 : i32
    %c0_i32_1 = arith.constant 0 : i32
    return %c0_i32, %c0_i32_0 : i32, i32
  }
  func.func @transform_5(%arg0: i32, %arg1: i32) -> (i32, i32) {
    %c0_i32 = arith.constant 0 : i32
    %c0_i32_0 = arith.constant 0 : i32
    return %arg0, %c0_i32 : i32, i32
  }
}

</mosaic_0001>

<llo_original>
// kernel: mlp_forward.1
$region0: #{mlp_forward.1}
  #allocation0 [shape = 'u32[]', space=smem, size = 0x4, offset = 0x4, fixed_abs, tag = 'smem constant byte address 0x4 - core index']
  #allocation1 [shape = 'u32[144,128]{1,0:T(1,128)}', space=vmem, size = 0x12000, scoped, tag = 'internal scratch']
  #allocation2 [shape = 'f32[16,128]{1,0:T(8,128)}', space=vmem, size = 0x2000, scoped, tag = 'scratch operand']
  %s0 = inlined_call_operand.vmem [shape: f32[16,128], index: 0, kind: input, shape index: {}]
  %s1 = inlined_call_operand.hbm [shape: bf16[128,128], index: 1, kind: input, shape index: {}]
  %s2 = inlined_call_operand.vmem [shape: f32[1,128], index: 2, kind: input, shape index: {}]
  %s3 = inlined_call_operand.hbm [shape: bf16[128,128], index: 3, kind: input, shape index: {}]
  %s4 = inlined_call_operand.vmem [shape: f32[1,128], index: 4, kind: input, shape index: {}]
  %s5 = inlined_call_operand.hbm [shape: f32[16,128], index: 5, kind: output, shape index: {}]
  %s6 = sld [smem:[#allocation0]]
  $region46: #{mlp_forward.1} parent=0
    _
  %s8 = ssub.s32 1, %s6
  %s9 = scalar_select 0, %s8, %s6
  $region1: #{mlp_forward.1} parent=0
    #allocation3 [shape = 'u8[32768]{0}', space=vmem, size = 0x8000, scoped, tag = 'input window, operand 1, single buffered']
    #allocation4 [shape = 's32[1]{0}', space=sflag, size = 0x4, scoped, tag = 'scoped memory for mlp_forward.1']
    #allocation5 [shape = 's32[1]{0}', space=sflag, size = 0x4, scoped, tag = 'scoped memory for mlp_forward.1']
    #allocation6 [shape = 'u8[32768]{0}', space=vmem, size = 0x8000, scoped, tag = 'input window, operand 3, single buffered']
    #allocation7 [shape = 's32[1]{0}', space=sflag, size = 0x4, scoped, tag = 'scoped memory for mlp_forward.1']
    #allocation8 [shape = 'u8[8192]{0}', space=vmem, size = 0x2000, scoped, tag = 'output window, operand 0, single buffered']
    %10 = vsyncpa [#allocation4], 0
    %11 = vsyncpa [#allocation7], 0
    %12 = vsyncpa [#allocation5], 0
    // Predicated region
    $region2: #{mlp_forward.1} parent=1 // pred_check
      _
    $region3: #{mlp_forward.1} parent=1 // pred_check_branch
      %14 = sbr.rel (0) target = $region5
    $region4: #{mlp_forward.1} parent=1 // pred_region
      _
    $region5: #{mlp_forward.1} parent=1 // pred_fallthru
      _
    // Predicated region
    $region6: #{mlp_forward.1} parent=1 // pred_check
      _
    $region7: #{mlp_forward.1} parent=1 // pred_check_branch
      %16 = sbr.rel (0) target = $region9
    $region8: #{mlp_forward.1} parent=1 // pred_region
      %s18 = ssub.s32 1024, 1024
      %19 = vsyncadd [#allocation4], %s18
      %s20 = sshll.u32 [#allocation3], 4
      %s21 = int_to_ptr.vmem [resolvable:$true] %s20
      %26 = dma.hbm_to_vmem [thread:$0]  %s1, 1024, %s21, [#allocation4], 64, 64, 4
    $region9: #{mlp_forward.1} parent=1 // pred_fallthru
      _
    // Predicated region
    $region10: #{mlp_forward.1} parent=1 // pred_check
      _
    $region11: #{mlp_forward.1} parent=1 // pred_check_branch
      %28 = sbr.rel (0) target = $region13
    $region12: #{mlp_forward.1} parent=1 // pred_region
      _
    $region13: #{mlp_forward.1} parent=1 // pred_fallthru
      _
    // Predicated region
    $region14: #{mlp_forward.1} parent=1 // pred_check
      _
    $region15: #{mlp_forward.1} parent=1 // pred_check_branch
      %30 = sbr.rel (0) target = $region17
    $region16: #{mlp_forward.1} parent=1 // pred_region
      %s32 = ssub.s32 1024, 1024
      %33 = vsyncadd [#allocation7], %s32
      %s34 = sshll.u32 [#allocation6], 4
      %s35 = int_to_ptr.vmem [resolvable:$true] %s34
      %40 = dma.hbm_to_vmem [thread:$0]  %s3, 1024, %s35, [#allocation7], 64, 64, 4
    $region17: #{mlp_forward.1} parent=1 // pred_fallthru
      _
    // Predicated region
    $region18: #{mlp_forward.1} parent=1 // pred_check
      _
    $region19: #{mlp_forward.1} parent=1 // pred_check_branch
      %42 = sbr.rel (0) target = $region21
    $region20: #{mlp_forward.1} parent=1 // pred_region
      _
    $region21: #{mlp_forward.1} parent=1 // pred_fallthru
      _
    // Predicated region
    $region22: #{mlp_forward.1} parent=1 // pred_check
      _
    $region23: #{mlp_forward.1} parent=1 // pred_check_branch
      %44 = sbr.rel (0) target = $region25
    $region24: #{mlp_forward.1} parent=1 // pred_region
      %45 = dma.done [#allocation4], 1024
    $region25: #{mlp_forward.1} parent=1 // pred_fallthru
      _
    // Predicated region
    $region26: #{mlp_forward.1} parent=1 // pred_check
      _
    $region27: #{mlp_forward.1} parent=1 // pred_check_branch
      %47 = sbr.rel (0) target = $region29
    $region28: #{mlp_forward.1} parent=1 // pred_region
      %48 = dma.done [#allocation7], 1024
    $region29: #{mlp_forward.1} parent=1 // pred_fallthru
      _
    %p50 = scmp.eq.s32.totalorder 0, 0
    // Predicated region
    $region30: #{mlp_forward.1} parent=1 // pred_check
      %p51 = pneg %p50
    $region31: #{mlp_forward.1} parent=1 // pred_check_branch
      %53 = sbr.rel (%p51) target = $region33
    $region32: #{mlp_forward.1} parent=1 // pred_region
      %54 = vst [vmem:[#allocation2] sm:$0xff] 0.0
      %55 = vst [vmem:[#allocation2 + $0x8] sm:$0xff] 0.0
    $region33: #{mlp_forward.1} parent=1 // pred_fallthru
      _
    %v56 = vld [vmem:[%s0] sm:$0xff]
    %v57 = vld [vmem:[%s0 + $0x8] sm:$0xff]
    %v58 = vpack.c.bf16 %v57, %v56
    %v59 = vld [vmem:[#allocation3] sm:$0xf]
    %v60 = vld [vmem:[#allocation3 + $0x4] sm:$0xf]
    %v61 = vld [vmem:[#allocation3 + $0x8] sm:$0xf]
    %v62 = vld [vmem:[#allocation3 + $0xc] sm:$0xf]
    %v63 = vld [vmem:[#allocation3 + $0x10] sm:$0xf]
    %v64 = vld [vmem:[#allocation3 + $0x14] sm:$0xf]
    %v65 = vld [vmem:[#allocation3 + $0x18] sm:$0xf]
    %v66 = vld [vmem:[#allocation3 + $0x1c] sm:$0xf]
    %v67 = vld [vmem:[#allocation3 + $0x20] sm:$0xf]
    %v68 = vld [vmem:[#allocation3 + $0x24] sm:$0xf]
    %v69 = vld [vmem:[#allocation3 + $0x28] sm:$0xf]
    %v70 = vld [vmem:[#allocation3 + $0x2c] sm:$0xf]
    %v71 = vld [vmem:[#allocation3 + $0x30] sm:$0xf]
    %v72 = vld [vmem:[#allocation3 + $0x34] sm:$0xf]
    %v73 = vld [vmem:[#allocation3 + $0x38] sm:$0xf]
    %v74 = vld [vmem:[#allocation3 + $0x3c] sm:$0xf]
    %v75 = vld [vmem:[%s2] sm:$0x1]
    %v77 = vlaneseq
    %v78 = vshrl.u32 %v77, 7
    %v79 = vsub.s32 0, %v78
    %v80 = vrot.slane %v75, %v79
    %v98 = vunpack.c.l.b16 %v59
    %v99 = vunpack.c.l.b16 %v60
    %v100 = vunpack.c.l.b16 %v61
    %v101 = vunpack.c.l.b16 %v62
    %v102 = vunpack.c.l.b16 %v63
    %v103 = vunpack.c.l.b16 %v64
    %v104 = vunpack.c.l.b16 %v65
    %v105 = vunpack.c.l.b16 %v66
    %v106 = vunpack.c.l.b16 %v67
    %v107 = vunpack.c.l.b16 %v68
    %v108 = vunpack.c.l.b16 %v69
    %v109 = vunpack.c.l.b16 %v70
    %v110 = vunpack.c.l.b16 %v71
    %v111 = vunpack.c.l.b16 %v72
    %v112 = vunpack.c.l.b16 %v73
    %v113 = vunpack.c.l.b16 %v74
    %v114 = vpack.c.b16 %v99, %v98
    %v115 = vpack.c.b16 %v101, %v100
    %v116 = vpack.c.b16 %v103, %v102
    %v117 = vpack.c.b16 %v105, %v104
    %v118 = vpack.c.b16 %v107, %v106
    %v119 = vpack.c.b16 %v109, %v108
    %v120 = vpack.c.b16 %v111, %v110
    %v121 = vpack.c.b16 %v113, %v112
    %130 = vmatprep.subr.bf16.mxu0 0
    %131 = vmatpush1.bf16.msra.mxu0 %v114
    %132 = vmatprep.subr.bf16.mxu0 0
    %133 = vmatpush1.bf16.msra.mxu0 %v115
    %134 = vmatprep.subr.bf16.mxu0 0
    %135 = vmatpush1.bf16.msra.mxu0 %v116
    %136 = vmatprep.subr.bf16.mxu0 0
    %137 = vmatpush1.bf16.msra.mxu0 %v117
    %138 = vmatprep.subr.bf16.mxu0 0
    %139 = vmatpush1.bf16.msra.mxu0 %v118
    %140 = vmatprep.subr.bf16.mxu0 0
    %141 = vmatpush1.bf16.msra.mxu0 %v119
    %142 = vmatprep.subr.bf16.mxu0 0
    %143 = vmatpush1.bf16.msra.mxu0 %v120
    %144 = vmatprep.subr.bf16.mxu0 0
    %145 = vmatpush1.bf16.msra.mxu0 %v121
    %146 = vmatprep.subr.bf16.mxu0 0
    %147 = vmatpush1.bf16.msra.mxu0 0
    %148 = vmatprep.subr.bf16.mxu0 0
    %149 = vmatpush1.bf16.msra.mxu0 0
    %150 = vmatprep.subr.bf16.mxu0 0
    %151 = vmatpush1.bf16.msra.mxu0 0
    %152 = vmatprep.subr.bf16.mxu0 0
    %153 = vmatpush1.bf16.msra.mxu0 0
    %154 = vmatprep.subr.bf16.mxu0 0
    %155 = vmatpush1.bf16.msra.mxu0 0
    %156 = vmatprep.subr.bf16.mxu0 0
    %157 = vmatpush1.bf16.msra.mxu0 0
    %158 = vmatprep.subr.bf16.mxu0 0
    %159 = vmatpush1.bf16.msra.mxu0 0
    %160 = vmatprep.subr.bf16.mxu0 0
    %161 = vmatpush1.bf16.msra.mxu0 0
    %162 = vmatprep.mubr.bf16.mxu0 0
    %163 = vmatmul.mubr.bf16.gmra.mrb[0].mxu0 %v58
    %v164 = vpop.f32.mrb[0].mxu0
    %v165 = vadd.f32 %v80, %v164
    %v166 = vpop.f32.mrb[0].mxu0
    %v167 = vpop.f32.mrb[0].mxu0
    %v168 = vadd.f32 %v80, %v167
    %v169 = vpop.f32.mrb[0].mxu0
    %170 = vdwg.mxu0
    %v171 = vmax.f32 %v165, 0.0
    %v172 = vmax.f32 %v168, 0.0
    %v173 = vld [vmem:[#allocation2] sm:$0xff]
    %v174 = vld [vmem:[#allocation2 + $0x8] sm:$0xff]
    %v175 = vpack.c.bf16 %v172, %v171
    %v176 = vld [vmem:[#allocation6] sm:$0xf]
    %v177 = vld [vmem:[#allocation6 + $0x4] sm:$0xf]
    %v178 = vld [vmem:[#allocation6 + $0x8] sm:$0xf]
    %v179 = vld [vmem:[#allocation6 + $0xc] sm:$0xf]
    %v180 = vld [vmem:[#allocation6 + $0x10] sm:$0xf]
    %v181 = vld [vmem:[#allocation6 + $0x14] sm:$0xf]
    %v182 = vld [vmem:[#allocation6 + $0x18] sm:$0xf]
    %v183 = vld [vmem:[#allocation6 + $0x1c] sm:$0xf]
    %v184 = vld [vmem:[#allocation6 + $0x20] sm:$0xf]
    %v185 = vld [vmem:[#allocation6 + $0x24] sm:$0xf]
    %v186 = vld [vmem:[#allocation6 + $0x28] sm:$0xf]
    %v187 = vld [vmem:[#allocation6 + $0x2c] sm:$0xf]
    %v188 = vld [vmem:[#allocation6 + $0x30] sm:$0xf]
    %v189 = vld [vmem:[#allocation6 + $0x34] sm:$0xf]
    %v190 = vld [vmem:[#allocation6 + $0x38] sm:$0xf]
    %v191 = vld [vmem:[#allocation6 + $0x3c] sm:$0xf]
    %v208 = vunpack.c.l.b16 %v176
    %v209 = vunpack.c.l.b16 %v177
    %v210 = vunpack.c.l.b16 %v178
    %v211 = vunpack.c.l.b16 %v179
    %v212 = vunpack.c.l.b16 %v180
    %v213 = vunpack.c.l.b16 %v181
    %v214 = vunpack.c.l.b16 %v182
    %v215 = vunpack.c.l.b16 %v183
    %v216 = vunpack.c.l.b16 %v184
    %v217 = vunpack.c.l.b16 %v185
    %v218 = vunpack.c.l.b16 %v186
    %v219 = vunpack.c.l.b16 %v187
    %v220 = vunpack.c.l.b16 %v188
    %v221 = vunpack.c.l.b16 %v189
    %v222 = vunpack.c.l.b16 %v190
    %v223 = vunpack.c.l.b16 %v191
    %v224 = vpack.c.b16 %v209, %v208
    %v225 = vpack.c.b16 %v211, %v210
    %v226 = vpack.c.b16 %v213, %v212
    %v227 = vpack.c.b16 %v215, %v214
    %v228 = vpack.c.b16 %v217, %v216
    %v229 = vpack.c.b16 %v219, %v218
    %v230 = vpack.c.b16 %v221, %v220
    %v231 = vpack.c.b16 %v223, %v222
    %240 = vmatprep.subr.bf16.mxu0 0
    %241 = vmatpush1.bf16.msra.mxu0 %v224
    %242 = vmatprep.subr.bf16.mxu0 0
    %243 = vmatpush1.bf16.msra.mxu0 %v225
    %244 = vmatprep.subr.bf16.mxu0 0
    %245 = vmatpush1.bf16.msra.mxu0 %v226
    %246 = vmatprep.subr.bf16.mxu0 0
    %247 = vmatpush1.bf16.msra.mxu0 %v227
    %248 = vmatprep.subr.bf16.mxu0 0
    %249 = vmatpush1.bf16.msra.mxu0 %v228
    %250 = vmatprep.subr.bf16.mxu0 0
    %251 = vmatpush1.bf16.msra.mxu0 %v229
    %252 = vmatprep.subr.bf16.mxu0 0
    %253 = vmatpush1.bf16.msra.mxu0 %v230
    %254 = vmatprep.subr.bf16.mxu0 0
    %255 = vmatpush1.bf16.msra.mxu0 %v231
    %256 = vmatprep.subr.bf16.mxu0 0
    %257 = vmatpush1.bf16.msra.mxu0 0
    %258 = vmatprep.subr.bf16.mxu0 0
    %259 = vmatpush1.bf16.msra.mxu0 0
    %260 = vmatprep.subr.bf16.mxu0 0
    %261 = vmatpush1.bf16.msra.mxu0 0
    %262 = vmatprep.subr.bf16.mxu0 0
    %263 = vmatpush1.bf16.msra.mxu0 0
    %264 = vmatprep.subr.bf16.mxu0 0
    %265 = vmatpush1.bf16.msra.mxu0 0
    %266 = vmatprep.subr.bf16.mxu0 0
    %267 = vmatpush1.bf16.msra.mxu0 0
    %268 = vmatprep.subr.bf16.mxu0 0
    %269 = vmatpush1.bf16.msra.mxu0 0
    %270 = vmatprep.subr.bf16.mxu0 0
    %271 = vmatpush1.bf16.msra.mxu0 0
    %272 = vmatprep.mubr.bf16.mxu0 0
    %273 = vmatmul.mubr.bf16.gmra.mrb[0].mxu0 %v175
    %v274 = vpop.f32.mrb[0].mxu0
    %v275 = vadd.f32 0.0, %v274
    %v276 = vpop.f32.mrb[0].mxu0
    %v277 = vpop.f32.mrb[0].mxu0
    %v278 = vadd.f32 0.0, %v277
    %v279 = vpop.f32.mrb[0].mxu0
    %280 = vdwg.mxu0
    %v281 = vadd.f32 %v173, %v275
    %v282 = vadd.f32 %v174, %v278
    %283 = vst [vmem:[#allocation2] sm:$0xff] %v281
    %284 = vst [vmem:[#allocation2 + $0x8] sm:$0xff] %v282
    // Predicated region
    $region34: #{mlp_forward.1} parent=1 // pred_check
      %p285 = pneg %p50
    $region35: #{mlp_forward.1} parent=1 // pred_check_branch
      %287 = sbr.rel (%p285) target = $region37
    $region36: #{mlp_forward.1} parent=1 // pred_region
      %v288 = vld [vmem:[#allocation2] sm:$0xff]
      %v289 = vld [vmem:[#allocation2 + $0x8] sm:$0xff]
      %v290 = vld [vmem:[%s4] sm:$0x1]
      %v292 = vlaneseq
      %v293 = vshrl.u32 %v292, 7
      %v294 = vsub.s32 0, %v293
      %v295 = vrot.slane %v290, %v294
      %v297 = vadd.f32 %v288, %v295
      %v298 = vadd.f32 %v289, %v295
      %299 = vst [vmem:[#allocation8] sm:$0xff] %v297
      %300 = vst [vmem:[#allocation8 + $0x8] sm:$0xff] %v298
    $region37: #{mlp_forward.1} parent=1 // pred_fallthru
      _
    // Predicated region
    $region38: #{mlp_forward.1} parent=1 // pred_check
      _
    $region39: #{mlp_forward.1} parent=1 // pred_check_branch
      %302 = sbr.rel (0) target = $region41
    $region40: #{mlp_forward.1} parent=1 // pred_region
      %s304 = ssub.s32 256, 256
      %305 = vsyncadd [#allocation5], %s304
      %s306 = sshll.u32 [#allocation8], 4
      %s307 = int_to_ptr.vmem [resolvable:$true] %s306
      %312 = dma.vmem_to_hbm [thread:$0]  %s307, 256, %s5, [#allocation5], 128, 128, 8
    $region41: #{mlp_forward.1} parent=1 // pred_fallthru
      _
    // Predicated region
    $region42: #{mlp_forward.1} parent=1 // pred_check
      _
    $region43: #{mlp_forward.1} parent=1 // pred_check_branch
      %314 = sbr.rel (0) target = $region45
    $region44: #{mlp_forward.1} parent=1 // pred_region
      %315 = dma.done [#allocation5], 256
    $region45: #{mlp_forward.1} parent=1 // pred_fallthru
      _
    %316 = vsyncpa [#allocation4], 1
    %317 = vsyncpa [#allocation7], 1
    %318 = vsyncpa [#allocation5], 1

</llo_original>
